<compile_context>
chip_gen: v7x
topology: tpu7x:2x2x1
jax: 0.10.0
libtpu: 0.0.40
codegen_flags: <defaults>
</compile_context>

<pallas_src>
import functools

import jax
import jax.numpy as jnp
from jax.experimental import pallas as pl
from jax.experimental.pallas import tpu as pltpu

SMOOTH = 0.0001
_LANE = 128
_SUB = 8


def _cdiv(a, b):
    return -(-a // b)


def _round_up(a, b):
    return _cdiv(a, b) * b


def _pn_dice_kernel(alpha, beta, n_feat,
                    logits_ref, targets_ref, out_ref,
                    sl, st, sl2, slt, sl2t):
    r = pl.program_id(1)

    @pl.when(r == 0)
    def _():
        sl[...] = jnp.zeros_like(sl)
        st[...] = jnp.zeros_like(st)
        sl2[...] = jnp.zeros_like(sl2)
        slt[...] = jnp.zeros_like(slt)
        sl2t[...] = jnp.zeros_like(sl2t)

    l = logits_ref[...].astype(jnp.float32)   # (TB, TR, 128)
    t = targets_ref[...].astype(jnp.float32)

    l2 = l * l
    lt = l * t
    l2t = l2 * t

    def rsum(x):
        # (TB, TR, 128) -> (TB, 1)
        return jnp.sum(jnp.sum(x, axis=-1), axis=-1, keepdims=True)

    sl[...] += rsum(l)
    st[...] += rsum(t)
    sl2[...] += rsum(l2)
    slt[...] += rsum(lt)
    sl2t[...] += rsum(l2t)

    @pl.when(r == pl.num_programs(1) - 1)
    def _():
        sum_l = sl[...]
        sum_t = st[...]
        sum_l2 = sl2[...]
        sum_lt = slt[...]
        sum_l2t = sl2t[...]

        # positive = logits**2 * targets  ->  Σ pos = Σ l² t
        pos = sum_l2t
        # Σ (1-l)²       = N - 2Σl + Σl²
        nl2 = n_feat - 2.0 * sum_l + sum_l2
        # Σ (1-t)        = N - Σt
        nt = n_feat - sum_t
        # Σ (1-l)²(1-t)  = N - Σt - 2Σl + 2Σlt + Σl² - Σl²t
        neg = nt - 2.0 * (sum_l - sum_lt) + (sum_l2 - sum_l2t)

        p_dice = (pos + SMOOTH) / (sum_l2 + sum_t + SMOOTH)
        n_dice = (neg + SMOOTH) / (nl2 + nt + SMOOTH)
        out_ref[...] = 1.0 - 2.0 * (alpha * p_dice + beta * n_dice)


def pn_dice_loss(logits, targets, *, alpha=0.6, beta=0.4):
    assert logits.shape == targets.shape and logits.ndim == 2
    B, N = logits.shape

    # Batch tile: full batch for small B (<=8), otherwise 8-row blocks.
    if B <= _SUB:
        tb = B
    else:
        tb = _SUB
    b_pad = _round_up(B, tb)

    # Row tile: target ~2 MiB per input tile (sized on the widest dtype).
    itemsize = max(jnp.dtype(logits.dtype).itemsize,
                   jnp.dtype(targets.dtype).itemsize)
    target_elems = max((2 << 20) // itemsize, tb * _SUB * _LANE)
    tr = max(_SUB, (target_elems // (tb * _LANE)) // _SUB * _SUB)

    r_needed = _cdiv(N, _LANE)
    if r_needed <= tr:
        tr = _round_up(r_needed, _SUB)
    r_pad = _round_up(r_needed, tr)
    n_pad = r_pad * _LANE

    def prep(x):
        # Zero padding is numerically safe: padded elements contribute 0 to
        # every accumulated sum; the finalize uses the true feature count N.
        if b_pad != B or n_pad != N:
            x = jnp.pad(x, ((0, b_pad - B), (0, n_pad - N)))
        return x.reshape(b_pad, r_pad, _LANE)

    lg = prep(logits)     # native dtype, cast to f32 inside the kernel
    tg = prep(targets)

    grid = (b_pad // tb, r_pad // tr)
    kernel = functools.partial(_pn_dice_kernel,
                               float(alpha), float(beta), float(N))

    out = pl.pallas_call(
        kernel,
        out_shape=jax.ShapeDtypeStruct((b_pad, 1), jnp.float32),
        grid_spec=pltpu.PrefetchScalarGridSpec(
            num_scalar_prefetch=0,
            grid=grid,
            in_specs=[
                pl.BlockSpec((tb, tr, _LANE), lambda b, r: (b, r, 0)),
                pl.BlockSpec((tb, tr, _LANE), lambda b, r: (b, r, 0)),
            ],
            out_specs=pl.BlockSpec((tb, 1), lambda b, r: (b, 0)),
            scratch_shapes=[pltpu.VMEM((tb, 1), jnp.float32)] * 5,
        ),
        compiler_params=pltpu.CompilerParams(
            dimension_semantics=("parallel", "arbitrary"),
            vmem_limit_bytes=48 << 20,
        ),
    )(lg, tg)
    return out[:B, 0]  # (B,)


def _reference(logits, targets, alpha=0.6, beta=0.4):
    smooth = 0.0001
    positive = logits ** 2 * targets          # reconstruction of undefined name
    negative = (1.0 - logits) ** 2 * (1.0 - targets)
    p_dice = (positive.sum(1) + smooth) / (
        (logits ** 2).sum(1) + targets.sum(1) + smooth)
    n_dice = (negative.sum(1) + smooth) / (
        ((1.0 - logits) ** 2).sum(1) + (1.0 - targets).sum(1) + smooth)
    return 1.0 - 2.0 * (alpha * p_dice + beta * n_dice)


if __name__ == "__main__":
    key = jax.random.PRNGKey(0)
    k1, k2 = jax.random.split(key)

    B, C, H, W = 2, 4, 16, 16
    N = C * H * W  # 1024 features per sample after flatten

    # Sigmoid-like probabilities as "logits" (as consumed by this dice loss)
    logits = jax.nn.sigmoid(jax.random.normal(k1, (B, N), dtype=jnp.float32))
    targets = (jax.random.uniform(k2, (B, N)) > 0.5).astype(jnp.float32)

    loss = pn_dice_loss(logits, targets, alpha=0.6, beta=0.4)
    loss = jax.block_until_ready(loss)

    ref = _reference(logits, targets)
    assert loss.shape == (B,)
    assert jnp.allclose(loss, ref, atol=1e-5, rtol=1e-5), (loss, ref)

    print("KERNEL_OK")
</pallas_src>

<mosaic_0001>
module attributes {stable_mosaic.version = 11 : i64} {
  func.func @_pn_dice_kernel(%arg0: i32, %arg1: i32, %arg2: memref<2x8x128xf32, #tpu.memory_space<vmem>>, %arg3: memref<2x8x128xf32, #tpu.memory_space<vmem>>, %arg4: memref<2x1xf32, #tpu.memory_space<vmem>>, %arg5: memref<2x1xf32, #tpu.memory_space<vmem>>, %arg6: memref<2x1xf32, #tpu.memory_space<vmem>>, %arg7: memref<2x1xf32, #tpu.memory_space<vmem>>, %arg8: memref<2x1xf32, #tpu.memory_space<vmem>>, %arg9: memref<2x1xf32, #tpu.memory_space<vmem>>) attributes {dimension_semantics = [#tpu.dimension_semantics<parallel>, #tpu.dimension_semantics<arbitrary>], iteration_bounds = array<i64: 1, 1>, scalar_prefetch = 0 : i64, scratch_operands = 5 : i64, tpu.core_type = #tpu.core_type<tc>, window_params = [{transform_indices = @transform_0, window_bounds = array<i64: 2, 8, 128>}, {transform_indices = @transform_1, window_bounds = array<i64: 2, 8, 128>}, {transform_indices = @transform_2, window_bounds = array<i64: 2, 1>}]} {
    %c0_i32 = arith.constant 0 : i32
    %0 = arith.cmpi eq, %arg1, %c0_i32 : i32
    %1 = arith.extui %0 : i1 to i32
    %c0_i32_0 = arith.constant 0 : i32
    %2 = arith.cmpi ne, %1, %c0_i32_0 : i32
    scf.if %2 {
      %cst_37 = arith.constant 0.000000e+00 : f32
      %41 = vector.broadcast %cst_37 : f32 to vector<2x1xf32>
      %c0_38 = arith.constant 0 : index
      %c0_39 = arith.constant 0 : index
      %42 = vector.load %arg5[%c0_38, %c0_39] : memref<2x1xf32, #tpu.memory_space<vmem>>, vector<2x1xf32>
      tpu.vector_store %arg5[%c0_38, %c0_39], %41 {strides = array<i32>} : memref<2x1xf32, #tpu.memory_space<vmem>>, vector<2x1xf32>,
      %cst_40 = arith.constant 0.000000e+00 : f32
      %43 = vector.broadcast %cst_40 : f32 to vector<2x1xf32>
      %c0_41 = arith.constant 0 : index
      %c0_42 = arith.constant 0 : index
      %44 = vector.load %arg6[%c0_41, %c0_42] : memref<2x1xf32, #tpu.memory_space<vmem>>, vector<2x1xf32>
      tpu.vector_store %arg6[%c0_41, %c0_42], %43 {strides = array<i32>} : memref<2x1xf32, #tpu.memory_space<vmem>>, vector<2x1xf32>,
      %cst_43 = arith.constant 0.000000e+00 : f32
      %45 = vector.broadcast %cst_43 : f32 to vector<2x1xf32>
      %c0_44 = arith.constant 0 : index
      %c0_45 = arith.constant 0 : index
      %46 = vector.load %arg7[%c0_44, %c0_45] : memref<2x1xf32, #tpu.memory_space<vmem>>, vector<2x1xf32>
      tpu.vector_store %arg7[%c0_44, %c0_45], %45 {strides = array<i32>} : memref<2x1xf32, #tpu.memory_space<vmem>>, vector<2x1xf32>,
      %cst_46 = arith.constant 0.000000e+00 : f32
      %47 = vector.broadcast %cst_46 : f32 to vector<2x1xf32>
      %c0_47 = arith.constant 0 : index
      %c0_48 = arith.constant 0 : index
      %48 = vector.load %arg8[%c0_47, %c0_48] : memref<2x1xf32, #tpu.memory_space<vmem>>, vector<2x1xf32>
      tpu.vector_store %arg8[%c0_47, %c0_48], %47 {strides = array<i32>} : memref<2x1xf32, #tpu.memory_space<vmem>>, vector<2x1xf32>,
      %cst_49 = arith.constant 0.000000e+00 : f32
      %49 = vector.broadcast %cst_49 : f32 to vector<2x1xf32>
      %c0_50 = arith.constant 0 : index
      %c0_51 = arith.constant 0 : index
      %50 = vector.load %arg9[%c0_50, %c0_51] : memref<2x1xf32, #tpu.memory_space<vmem>>, vector<2x1xf32>
      tpu.vector_store %arg9[%c0_50, %c0_51], %49 {strides = array<i32>} : memref<2x1xf32, #tpu.memory_space<vmem>>, vector<2x1xf32>,
    } else {
    }
    %c0 = arith.constant 0 : index
    %c0_1 = arith.constant 0 : index
    %c0_2 = arith.constant 0 : index
    %3 = vector.load %arg2[%c0, %c0_1, %c0_2] : memref<2x8x128xf32, #tpu.memory_space<vmem>>, vector<2x8x128xf32>
    %c0_3 = arith.constant 0 : index
    %c0_4 = arith.constant 0 : index
    %c0_5 = arith.constant 0 : index
    %4 = vector.load %arg3[%c0_3, %c0_4, %c0_5] : memref<2x8x128xf32, #tpu.memory_space<vmem>>, vector<2x8x128xf32>
    %5 = arith.mulf %3, %3 : vector<2x8x128xf32>
    %6 = arith.mulf %3, %4 : vector<2x8x128xf32>
    %7 = arith.mulf %5, %4 : vector<2x8x128xf32>
    %c0_6 = arith.constant 0 : index
    %c0_7 = arith.constant 0 : index
    %8 = vector.load %arg5[%c0_6, %c0_7] : memref<2x1xf32, #tpu.memory_space<vmem>>, vector<2x1xf32>
    %cst = arith.constant dense<0.000000e+00> : vector<2x8xf32>
    %9 = vector.multi_reduction <add>, %3, %cst [2] : vector<2x8x128xf32> to vector<2x8xf32>
    %cst_8 = arith.constant dense<0.000000e+00> : vector<2xf32>
    %10 = vector.multi_reduction <add>, %9, %cst_8 [1] : vector<2x8xf32> to vector<2xf32>
    %11 = vector.shape_cast %10 : vector<2xf32> to vector<2x1xf32>
    %12 = arith.addf %8, %11 : vector<2x1xf32>
    %c0_9 = arith.constant 0 : index
    %c0_10 = arith.constant 0 : index
    %13 = vector.load %arg5[%c0_9, %c0_10] : memref<2x1xf32, #tpu.memory_space<vmem>>, vector<2x1xf32>
    tpu.vector_store %arg5[%c0_9, %c0_10], %12 {strides = array<i32>} : memref<2x1xf32, #tpu.memory_space<vmem>>, vector<2x1xf32>,
    %c0_11 = arith.constant 0 : index
    %c0_12 = arith.constant 0 : index
    %14 = vector.load %arg6[%c0_11, %c0_12] : memref<2x1xf32, #tpu.memory_space<vmem>>, vector<2x1xf32>
    %cst_13 = arith.constant dense<0.000000e+00> : vector<2x8xf32>
    %15 = vector.multi_reduction <add>, %4, %cst_13 [2] : vector<2x8x128xf32> to vector<2x8xf32>
    %cst_14 = arith.constant dense<0.000000e+00> : vector<2xf32>
    %16 = vector.multi_reduction <add>, %15, %cst_14 [1] : vector<2x8xf32> to vector<2xf32>
    %17 = vector.shape_cast %16 : vector<2xf32> to vector<2x1xf32>
    %18 = arith.addf %14, %17 : vector<2x1xf32>
    %c0_15 = arith.constant 0 : index
    %c0_16 = arith.constant 0 : index
    %19 = vector.load %arg6[%c0_15, %c0_16] : memref<2x1xf32, #tpu.memory_space<vmem>>, vector<2x1xf32>
    tpu.vector_store %arg6[%c0_15, %c0_16], %18 {strides = array<i32>} : memref<2x1xf32, #tpu.memory_space<vmem>>, vector<2x1xf32>,
    %c0_17 = arith.constant 0 : index
    %c0_18 = arith.constant 0 : index
    %20 = vector.load %arg7[%c0_17, %c0_18] : memref<2x1xf32, #tpu.memory_space<vmem>>, vector<2x1xf32>
    %cst_19 = arith.constant dense<0.000000e+00> : vector<2x8xf32>
    %21 = vector.multi_reduction <add>, %5, %cst_19 [2] : vector<2x8x128xf32> to vector<2x8xf32>
    %cst_20 = arith.constant dense<0.000000e+00> : vector<2xf32>
    %22 = vector.multi_reduction <add>, %21, %cst_20 [1] : vector<2x8xf32> to vector<2xf32>
    %23 = vector.shape_cast %22 : vector<2xf32> to vector<2x1xf32>
    %24 = arith.addf %20, %23 : vector<2x1xf32>
    %c0_21 = arith.constant 0 : index
    %c0_22 = arith.constant 0 : index
    %25 = vector.load %arg7[%c0_21, %c0_22] : memref<2x1xf32, #tpu.memory_space<vmem>>, vector<2x1xf32>
    tpu.vector_store %arg7[%c0_21, %c0_22], %24 {strides = array<i32>} : memref<2x1xf32, #tpu.memory_space<vmem>>, vector<2x1xf32>,
    %c0_23 = arith.constant 0 : index
    %c0_24 = arith.constant 0 : index
    %26 = vector.load %arg8[%c0_23, %c0_24] : memref<2x1xf32, #tpu.memory_space<vmem>>, vector<2x1xf32>
    %cst_25 = arith.constant dense<0.000000e+00> : vector<2x8xf32>
    %27 = vector.multi_reduction <add>, %6, %cst_25 [2] : vector<2x8x128xf32> to vector<2x8xf32>
    %cst_26 = arith.constant dense<0.000000e+00> : vector<2xf32>
    %28 = vector.multi_reduction <add>, %27, %cst_26 [1] : vector<2x8xf32> to vector<2xf32>
    %29 = vector.shape_cast %28 : vector<2xf32> to vector<2x1xf32>
    %30 = arith.addf %26, %29 : vector<2x1xf32>
    %c0_27 = arith.constant 0 : index
    %c0_28 = arith.constant 0 : index
    %31 = vector.load %arg8[%c0_27, %c0_28] : memref<2x1xf32, #tpu.memory_space<vmem>>, vector<2x1xf32>
    tpu.vector_store %arg8[%c0_27, %c0_28], %30 {strides = array<i32>} : memref<2x1xf32, #tpu.memory_space<vmem>>, vector<2x1xf32>,
    %c0_29 = arith.constant 0 : index
    %c0_30 = arith.constant 0 : index
    %32 = vector.load %arg9[%c0_29, %c0_30] : memref<2x1xf32, #tpu.memory_space<vmem>>, vector<2x1xf32>
    %cst_31 = arith.constant dense<0.000000e+00> : vector<2x8xf32>
    %33 = vector.multi_reduction <add>, %7, %cst_31 [2] : vector<2x8x128xf32> to vector<2x8xf32>
    %cst_32 = arith.constant dense<0.000000e+00> : vector<2xf32>
    %34 = vector.multi_reduction <add>, %33, %cst_32 [1] : vector<2x8xf32> to vector<2xf32>
    %35 = vector.shape_cast %34 : vector<2xf32> to vector<2x1xf32>
    %36 = arith.addf %32, %35 : vector<2x1xf32>
    %c0_33 = arith.constant 0 : index
    %c0_34 = arith.constant 0 : index
    %37 = vector.load %arg9[%c0_33, %c0_34] : memref<2x1xf32, #tpu.memory_space<vmem>>, vector<2x1xf32>
    tpu.vector_store %arg9[%c0_33, %c0_34], %36 {strides = array<i32>} : memref<2x1xf32, #tpu.memory_space<vmem>>, vector<2x1xf32>,
    %c0_i32_35 = arith.constant 0 : i32
    %38 = arith.cmpi eq, %arg1, %c0_i32_35 : i32
    %39 = arith.extui %38 : i1 to i32
    %c0_i32_36 = arith.constant 0 : i32
    %40 = arith.cmpi ne, %39, %c0_i32_36 : i32
    scf.if %40 {
      %c0_37 = arith.constant 0 : index
      %c0_38 = arith.constant 0 : index
      %41 = vector.load %arg5[%c0_37, %c0_38] : memref<2x1xf32, #tpu.memory_space<vmem>>, vector<2x1xf32>
      %c0_39 = arith.constant 0 : index
      %c0_40 = arith.constant 0 : index
      %42 = vector.load %arg6[%c0_39, %c0_40] : memref<2x1xf32, #tpu.memory_space<vmem>>, vector<2x1xf32>
      %c0_41 = arith.constant 0 : index
      %c0_42 = arith.constant 0 : index
      %43 = vector.load %arg7[%c0_41, %c0_42] : memref<2x1xf32, #tpu.memory_space<vmem>>, vector<2x1xf32>
      %c0_43 = arith.constant 0 : index
      %c0_44 = arith.constant 0 : index
      %44 = vector.load %arg8[%c0_43, %c0_44] : memref<2x1xf32, #tpu.memory_space<vmem>>, vector<2x1xf32>
      %c0_45 = arith.constant 0 : index
      %c0_46 = arith.constant 0 : index
      %45 = vector.load %arg9[%c0_45, %c0_46] : memref<2x1xf32, #tpu.memory_space<vmem>>, vector<2x1xf32>
      %cst_47 = arith.constant 2.000000e+00 : f32
      %46 = vector.broadcast %cst_47 : f32 to vector<2x1xf32>
      %47 = arith.mulf %46, %41 : vector<2x1xf32>
      %cst_48 = arith.constant 1.024000e+03 : f32
      %48 = vector.broadcast %cst_48 : f32 to vector<2x1xf32>
      %49 = arith.subf %48, %47 : vector<2x1xf32>
      %50 = arith.addf %49, %43 : vector<2x1xf32>
      %cst_49 = arith.constant 1.024000e+03 : f32
      %51 = vector.broadcast %cst_49 : f32 to vector<2x1xf32>
      %52 = arith.subf %51, %42 : vector<2x1xf32>
      %53 = arith.subf %41, %44 : vector<2x1xf32>
      %cst_50 = arith.constant 2.000000e+00 : f32
      %54 = vector.broadcast %cst_50 : f32 to vector<2x1xf32>
      %55 = arith.mulf %54, %53 : vector<2x1xf32>
      %56 = arith.subf %52, %55 : vector<2x1xf32>
      %57 = arith.subf %43, %45 : vector<2x1xf32>
      %58 = arith.addf %56, %57 : vector<2x1xf32>
      %cst_51 = arith.constant 9.99999974E-5 : f32
      %59 = vector.broadcast %cst_51 : f32 to vector<2x1xf32>
      %60 = arith.addf %45, %59 : vector<2x1xf32>
      %61 = arith.addf %43, %42 : vector<2x1xf32>
      %cst_52 = arith.constant 9.99999974E-5 : f32
      %62 = vector.broadcast %cst_52 : f32 to vector<2x1xf32>
      %63 = arith.addf %61, %62 : vector<2x1xf32>
      %64 = arith.divf %60, %63 : vector<2x1xf32>
      %cst_53 = arith.constant 9.99999974E-5 : f32
      %65 = vector.broadcast %cst_53 : f32 to vector<2x1xf32>
      %66 = arith.addf %58, %65 : vector<2x1xf32>
      %67 = arith.addf %50, %52 : vector<2x1xf32>
      %cst_54 = arith.constant 9.99999974E-5 : f32
      %68 = vector.broadcast %cst_54 : f32 to vector<2x1xf32>
      %69 = arith.addf %67, %68 : vector<2x1xf32>
      %70 = arith.divf %66, %69 : vector<2x1xf32>
      %cst_55 = arith.constant 6.000000e-01 : f32
      %71 = vector.broadcast %cst_55 : f32 to vector<2x1xf32>
      %72 = arith.mulf %71, %64 : vector<2x1xf32>
      %cst_56 = arith.constant 4.000000e-01 : f32
      %73 = vector.broadcast %cst_56 : f32 to vector<2x1xf32>
      %74 = arith.mulf %73, %70 : vector<2x1xf32>
      %75 = arith.addf %72, %74 : vector<2x1xf32>
      %cst_57 = arith.constant 2.000000e+00 : f32
      %76 = vector.broadcast %cst_57 : f32 to vector<2x1xf32>
      %77 = arith.mulf %76, %75 : vector<2x1xf32>
      %cst_58 = arith.constant 1.000000e+00 : f32
      %78 = vector.broadcast %cst_58 : f32 to vector<2x1xf32>
      %79 = arith.subf %78, %77 : vector<2x1xf32>
      %c0_59 = arith.constant 0 : index
      %c0_60 = arith.constant 0 : index
      %80 = vector.load %arg4[%c0_59, %c0_60] : memref<2x1xf32, #tpu.memory_space<vmem>>, vector<2x1xf32>
      tpu.vector_store %arg4[%c0_59, %c0_60], %79 {strides = array<i32>} : memref<2x1xf32, #tpu.memory_space<vmem>>, vector<2x1xf32>,
    } else {
    }
    return
  }
  func.func @transform_0(%arg0: i32, %arg1: i32) -> (i32, i32, i32) {
    %c0_i32 = arith.constant 0 : i32
    %c0_i32_0 = arith.constant 0 : i32
    return %arg0, %arg1, %c0_i32 : i32, i32, i32
  }
  func.func @transform_1(%arg0: i32, %arg1: i32) -> (i32, i32, i32) {
    %c0_i32 = arith.constant 0 : i32
    %c0_i32_0 = arith.constant 0 : i32
    return %arg0, %arg1, %c0_i32 : i32, i32, i32
  }
  func.func @transform_2(%arg0: i32, %arg1: i32) -> (i32, i32) {
    %c0_i32 = arith.constant 0 : i32
    %c0_i32_0 = arith.constant 0 : i32
    return %arg0, %c0_i32 : i32, i32
  }
}

</mosaic_0001>

<llo_original>
// kernel: tpu_custom_call.1
$region0: #{tpu_custom_call.1}
  #allocation0 [shape = 'u32[]', space=smem, size = 0x4, offset = 0x4, fixed_abs, tag = 'smem constant byte address 0x4 - core index']
  #allocation1 [shape = 'u32[144,128]{1,0:T(1,128)}', space=vmem, size = 0x12000, scoped, tag = 'internal scratch']
  #allocation2 [shape = 'f32[2,1]{1,0:T(2,128)}', space=vmem, size = 0x400, scoped, tag = 'scratch operand']
  #allocation3 [shape = 'f32[2,1]{1,0:T(2,128)}', space=vmem, size = 0x400, scoped, tag = 'scratch operand']
  #allocation4 [shape = 'f32[2,1]{1,0:T(2,128)}', space=vmem, size = 0x400, scoped, tag = 'scratch operand']
  #allocation5 [shape = 'f32[2,1]{1,0:T(2,128)}', space=vmem, size = 0x400, scoped, tag = 'scratch operand']
  #allocation6 [shape = 'f32[2,1]{1,0:T(2,128)}', space=vmem, size = 0x400, scoped, tag = 'scratch operand']
  %s0 = inlined_call_operand.hbm [shape: f32[2,8,128], index: 0, kind: input, shape index: {}]
  %s1 = inlined_call_operand.hbm [shape: f32[2,8,128], index: 1, kind: input, shape index: {}]
  %s2 = inlined_call_operand.vmem [shape: f32[2,1], index: 2, kind: output, shape index: {}]
  %s3 = sld [smem:[#allocation0]]
  $region34: #{tpu_custom_call.1} parent=0
    _
  %s5 = ssub.s32 1, %s3
  %s6 = scalar_select 0, %s5, %s3
  $region1: #{tpu_custom_call.1} parent=0
    #allocation7 [shape = 'u8[8192]{0}', space=vmem, size = 0x2000, scoped, tag = 'input window, operand 0, single buffered']
    #allocation8 [shape = 's32[1]{0}', space=sflag, size = 0x4, scoped, tag = 'scoped memory for tpu_custom_call.1']
    #allocation9 [shape = 'u8[8192]{0}', space=vmem, size = 0x2000, scoped, tag = 'input window, operand 1, single buffered']
    #allocation10 [shape = 's32[1]{0}', space=sflag, size = 0x4, scoped, tag = 'scoped memory for tpu_custom_call.1']
    %7 = vsyncpa [#allocation8], 0
    %8 = vsyncpa [#allocation10], 0
    // Predicated region
    $region2: #{tpu_custom_call.1} parent=1 // pred_check
      _
    $region3: #{tpu_custom_call.1} parent=1 // pred_check_branch
      %10 = sbr.rel (0) target = $region5
    $region4: #{tpu_custom_call.1} parent=1 // pred_region
      %s12 = ssub.s32 256, 256
      %13 = vsyncadd [#allocation8], %s12
      %s14 = sshll.u32 [#allocation7], 4
      %s15 = int_to_ptr.vmem [resolvable:$true] %s14
      %20 = dma.hbm_to_vmem [thread:$0]  %s0, 256, %s15, [#allocation8], 128, 128, 8
    $region5: #{tpu_custom_call.1} parent=1 // pred_fallthru
      _
    // Predicated region
    $region6: #{tpu_custom_call.1} parent=1 // pred_check
      _
    $region7: #{tpu_custom_call.1} parent=1 // pred_check_branch
      %22 = sbr.rel (0) target = $region9
    $region8: #{tpu_custom_call.1} parent=1 // pred_region
      %s24 = ssub.s32 256, 256
      %25 = vsyncadd [#allocation10], %s24
      %s26 = sshll.u32 [#allocation9], 4
      %s27 = int_to_ptr.vmem [resolvable:$true] %s26
      %32 = dma.hbm_to_vmem [thread:$0]  %s1, 256, %s27, [#allocation10], 128, 128, 8
    $region9: #{tpu_custom_call.1} parent=1 // pred_fallthru
      _
    // Predicated region
    $region10: #{tpu_custom_call.1} parent=1 // pred_check
      _
    $region11: #{tpu_custom_call.1} parent=1 // pred_check_branch
      %34 = sbr.rel (0) target = $region13
    $region12: #{tpu_custom_call.1} parent=1 // pred_region
      %35 = dma.done [#allocation8], 256
    $region13: #{tpu_custom_call.1} parent=1 // pred_fallthru
      _
    // Predicated region
    $region14: #{tpu_custom_call.1} parent=1 // pred_check
      _
    $region15: #{tpu_custom_call.1} parent=1 // pred_check_branch
      %37 = sbr.rel (0) target = $region17
    $region16: #{tpu_custom_call.1} parent=1 // pred_region
      %38 = dma.done [#allocation10], 256
    $region17: #{tpu_custom_call.1} parent=1 // pred_fallthru
      _
    %p39 = scmp.eq.s32.totalorder 0, 0
    // Predicated region
    $region18: #{tpu_custom_call.1} parent=1 // pred_check
      %p40 = pneg %p39
    $region19: #{tpu_custom_call.1} parent=1 // pred_check_branch
      %42 = sbr.rel (%p40) target = $region21
    $region20: #{tpu_custom_call.1} parent=1 // pred_region
      %vm43 = vcmask 1024
      %44 = vst.msk [vmem:[#allocation2] sm:$0x3] %vm43, 0.0
      %45 = vst.msk [vmem:[#allocation3] sm:$0x3] %vm43, 0.0
      %46 = vst.msk [vmem:[#allocation4] sm:$0x3] %vm43, 0.0
      %47 = vst.msk [vmem:[#allocation5] sm:$0x3] %vm43, 0.0
      %48 = vst.msk [vmem:[#allocation6] sm:$0x3] %vm43, 0.0
    $region21: #{tpu_custom_call.1} parent=1 // pred_fallthru
      _
    %v49 = vld [vmem:[#allocation7] sm:$0xff]
    %v50 = vld [vmem:[#allocation7 + $0x8] sm:$0xff]
    %v51 = vld [vmem:[#allocation9] sm:$0xff]
    %v52 = vld [vmem:[#allocation9 + $0x8] sm:$0xff]
    %v53 = vmul.f32 %v49, %v49
    %v54 = vmul.f32 %v50, %v50
    %v55 = vmul.f32 %v49, %v51
    %v56 = vmul.f32 %v50, %v52
    %v57 = vmul.f32 %v53, %v51
    %v58 = vmul.f32 %v54, %v52
    %v59 = vld [vmem:[#allocation2] sm:$0x3]
    %60 = vadd.xlane.f32.xlu0 %v49
    %v61 = vpop.xlane.xlu0 %60
    %62 = vadd.xlane.f32.xlu0 %v50
    %v63 = vpop.xlane.xlu0 %62
    %v66 = vlaneseq
    %v67 = vand.u32 %v66, 127
    %v68 = vlaneseq
    %v69 = vshrl.u32 %v68, 7
    %v70 = vsub.s32 %v67, %v69
    %v71 = vrot.slane %v61, %v70
    %v72 = vlaneseq
    %v73 = vshrl.u32 %v72, 7
    %v74 = vsub.s32 %v67, %v73
    %v75 = vrot.slane %v63, %v74
    %vm76 = vcmask 1041409
    %v77 = vsel %vm76, %v75, %v71
    %vm79 = vcmask 58368
    %v80 = vsel %vm79, %v77, 0.0
    %81 = vadd.xlane.f32.xlu0 %v80
    %v82 = vpop.xlane.xlu0 %81
    %v83 = vadd.f32 %v59, %v82
    %vm84 = vcmask 1024
    %85 = vst.msk [vmem:[#allocation2] sm:$0x3] %vm84, %v83
    %v86 = vld [vmem:[#allocation3] sm:$0x3]
    %87 = vadd.xlane.f32.xlu0 %v51
    %v88 = vpop.xlane.xlu0 %87
    %89 = vadd.xlane.f32.xlu0 %v52
    %v90 = vpop.xlane.xlu0 %89
    %v93 = vlaneseq
    %v94 = vshrl.u32 %v93, 7
    %v95 = vsub.s32 %v67, %v94
    %v96 = vrot.slane %v88, %v95
    %v97 = vlaneseq
    %v98 = vshrl.u32 %v97, 7
    %v99 = vsub.s32 %v67, %v98
    %v100 = vrot.slane %v90, %v99
    %v101 = vsel %vm76, %v100, %v96
    %v103 = vsel %vm79, %v101, 0.0
    %104 = vadd.xlane.f32.xlu0 %v103
    %v105 = vpop.xlane.xlu0 %104
    %v106 = vadd.f32 %v86, %v105
    %107 = vst.msk [vmem:[#allocation3] sm:$0x3] %vm84, %v106
    %v108 = vld [vmem:[#allocation4] sm:$0x3]
    %109 = vadd.xlane.f32.xlu0 %v53
    %v110 = vpop.xlane.xlu0 %109
    %111 = vadd.xlane.f32.xlu0 %v54
    %v112 = vpop.xlane.xlu0 %111
    %v115 = vlaneseq
    %v116 = vshrl.u32 %v115, 7
    %v117 = vsub.s32 %v67, %v116
    %v118 = vrot.slane %v110, %v117
    %v119 = vlaneseq
    %v120 = vshrl.u32 %v119, 7
    %v121 = vsub.s32 %v67, %v120
    %v122 = vrot.slane %v112, %v121
    %v123 = vsel %vm76, %v122, %v118
    %v125 = vsel %vm79, %v123, 0.0
    %126 = vadd.xlane.f32.xlu0 %v125
    %v127 = vpop.xlane.xlu0 %126
    %v128 = vadd.f32 %v108, %v127
    %129 = vst.msk [vmem:[#allocation4] sm:$0x3] %vm84, %v128
    %v130 = vld [vmem:[#allocation5] sm:$0x3]
    %131 = vadd.xlane.f32.xlu0 %v55
    %v132 = vpop.xlane.xlu0 %131
    %133 = vadd.xlane.f32.xlu0 %v56
    %v134 = vpop.xlane.xlu0 %133
    %v137 = vlaneseq
    %v138 = vshrl.u32 %v137, 7
    %v139 = vsub.s32 %v67, %v138
    %v140 = vrot.slane %v132, %v139
    %v141 = vlaneseq
    %v142 = vshrl.u32 %v141, 7
    %v143 = vsub.s32 %v67, %v142
    %v144 = vrot.slane %v134, %v143
    %v145 = vsel %vm76, %v144, %v140
    %v147 = vsel %vm79, %v145, 0.0
    %148 = vadd.xlane.f32.xlu0 %v147
    %v149 = vpop.xlane.xlu0 %148
    %v150 = vadd.f32 %v130, %v149
    %151 = vst.msk [vmem:[#allocation5] sm:$0x3] %vm84, %v150
    %v152 = vld [vmem:[#allocation6] sm:$0x3]
    %153 = vadd.xlane.f32.xlu0 %v57
    %v154 = vpop.xlane.xlu0 %153
    %155 = vadd.xlane.f32.xlu0 %v58
    %v156 = vpop.xlane.xlu0 %155
    %v159 = vlaneseq
    %v160 = vshrl.u32 %v159, 7
    %v161 = vsub.s32 %v67, %v160
    %v162 = vrot.slane %v154, %v161
    %v163 = vlaneseq
    %v164 = vshrl.u32 %v163, 7
    %v165 = vsub.s32 %v67, %v164
    %v166 = vrot.slane %v156, %v165
    %v167 = vsel %vm76, %v166, %v162
    %v169 = vsel %vm79, %v167, 0.0
    %170 = vadd.xlane.f32.xlu0 %v169
    %v171 = vpop.xlane.xlu0 %170
    %v172 = vadd.f32 %v152, %v171
    %173 = vst.msk [vmem:[#allocation6] sm:$0x3] %vm84, %v172
    // Predicated region
    $region22: #{tpu_custom_call.1} parent=1 // pred_check
      %p174 = pneg %p39
    $region23: #{tpu_custom_call.1} parent=1 // pred_check_branch
      %176 = sbr.rel (%p174) target = $region25
    $region24: #{tpu_custom_call.1} parent=1 // pred_region
      %v177 = vld [vmem:[#allocation2] sm:$0x3]
      %v178 = vld [vmem:[#allocation3] sm:$0x3]
      %v179 = vld [vmem:[#allocation4] sm:$0x3]
      %v180 = vld [vmem:[#allocation5] sm:$0x3]
      %v181 = vld [vmem:[#allocation6] sm:$0x3]
      %v182 = vmul.f32 %v177, 2.0
      %v183 = vsub.f32 1024.0, %v182
      %v184 = vadd.f32 %v183, %v179
      %v185 = vsub.f32 1024.0, %v178
      %v186 = vsub.f32 %v177, %v180
      %v187 = vmul.f32 %v186, 2.0
      %v188 = vsub.f32 %v185, %v187
      %v189 = vsub.f32 %v179, %v181
      %v190 = vadd.f32 %v188, %v189
      %v191 = vadd.f32 %v181, 0.0001
      %v192 = vadd.f32 %v179, %v178
      %v193 = vadd.f32 %v192, 0.0001
      %v194 = vrcp.pop %v193
      %v195 = vmul.f32 %v191, %v194
      %v196 = vadd.f32 %v190, 0.0001
      %v197 = vadd.f32 %v184, %v185
      %v198 = vadd.f32 %v197, 0.0001
      %v199 = vrcp.pop %v198
      %v200 = vmul.f32 %v196, %v199
      %v201 = vmul.f32 %v195, 0.6
      %v202 = vmul.f32 %v200, 0.4
      %v203 = vadd.f32 %v201, %v202
      %v204 = vmul.f32 %v203, 2.0
      %v205 = vsub.f32 1.0, %v204
      %206 = vst.msk [vmem:[%s2] sm:$0x3] %vm84, %v205
    $region25: #{tpu_custom_call.1} parent=1 // pred_fallthru
      _
    // Predicated region
    $region26: #{tpu_custom_call.1} parent=1 // pred_check
      _
    $region27: #{tpu_custom_call.1} parent=1 // pred_check_branch
      %208 = sbr.rel (0) target = $region29
    $region28: #{tpu_custom_call.1} parent=1 // pred_region
      _
    $region29: #{tpu_custom_call.1} parent=1 // pred_fallthru
      _
    // Predicated region
    $region30: #{tpu_custom_call.1} parent=1 // pred_check
      _
    $region31: #{tpu_custom_call.1} parent=1 // pred_check_branch
      %210 = sbr.rel (0) target = $region33
    $region32: #{tpu_custom_call.1} parent=1 // pred_region
      _
    $region33: #{tpu_custom_call.1} parent=1 // pred_fallthru
      _
    %211 = vsyncpa [#allocation8], 1
    %212 = vsyncpa [#allocation10], 1

</llo_original>
